<compile_context>
chip_gen: v7x
topology: tpu7x:2x2x1
jax: 0.10.0
libtpu: 0.0.40
codegen_flags: <defaults>
</compile_context>

<pallas_src>
import functools
import math

import jax
import jax.numpy as jnp
from jax.experimental import pallas as pl
from jax.experimental.pallas import tpu as pltpu


_VMEM_LIMIT = 64 * 1024 * 1024  # fits v7x's 64 MiB physical VMEM; > v5e/v6e defaults


# ----------------------------------------------------------------------------
# In-kernel helpers
# ----------------------------------------------------------------------------
def _ln(x, g, b, eps):
    xf = x.astype(jnp.float32)
    mu = jnp.mean(xf, axis=-1, keepdims=True)
    var = jnp.mean((xf - mu) * (xf - mu), axis=-1, keepdims=True)
    return (xf - mu) * jax.lax.rsqrt(var + eps) * g + b


def _apply_act(x, act):
    if act == "gelu":
        # matches the module: x * 0.5 * (1 + erf(x / 1.41421))
        return x * 0.5 * (1.0 + jax.lax.erf(x / 1.41421))
    if act == "relu":
        return jnp.maximum(x, 0.0)
    if act == "swish":
        return x * jax.nn.sigmoid(x)
    raise ValueError(f"unknown activation {act}")


def _pick_tm(m, cap=256):
    """Row-tile size: largest multiple-of-8 divisor of m that is <= cap."""
    if m <= cap:
        return m
    for t in range(cap, 7, -8):
        if m % t == 0:
            return t
    return m  # fall back to a single full block


# ----------------------------------------------------------------------------
# Kernels
# ----------------------------------------------------------------------------
def _qkv_kernel(x_ref, g_ref, b_ref, w_ref, bias_ref, o_ref, *, eps, pre_ln):
    """(optional pre-LN) + fused Q/K/V projection: [tm,H] @ [H,3H] + [1,3H]."""
    x = x_ref[...].astype(jnp.float32)
    if pre_ln:
        x = _ln(x, g_ref[...], b_ref[...], eps)
    y = jnp.dot(x, w_ref[...], preferred_element_type=jnp.float32) + bias_ref[...]
    o_ref[...] = y.astype(o_ref.dtype)


def _mha_kernel(qkv_ref, m_ref, o_ref, *, nh, scale, H):
    """Attention core for one batch element, all heads in one grid step.

    qkv_ref: [1, S, 3H]   (q | k | v concatenated on the lane axis)
    m_ref:   [1, 1, Sq, Sk] additive float mask
    o_ref:   [1, Sq, H]
    """
    qkv = qkv_ref[0]                       # [S, 3H]
    q = qkv[:, :H].astype(jnp.float32)
    k = qkv[:, H:2 * H].astype(jnp.float32)
    v = qkv[:, 2 * H:].astype(jnp.float32)
    m = m_ref[0, 0].astype(jnp.float32)    # [Sq, Sk]
    hd = H // nh
    for h in range(nh):                    # static loop; heads are contiguous H-chunks
        sl = slice(h * hd, (h + 1) * hd)
        qh = q[:, sl] * scale              # fold 1/sqrt(hd) into q (Sq*hd ops, not Sq*Sk)
        kh = k[:, sl]
        vh = v[:, sl]
        # s = qh @ kh^T + mask  (contraction over head_dim, no explicit transpose)
        s = jax.lax.dot_general(qh, kh, (((1,), (1,)), ((), ())),
                                preferred_element_type=jnp.float32) + m
        s = s - jnp.max(s, axis=-1, keepdims=True)
        p = jnp.exp(s)
        inv = pl.reciprocal(jnp.sum(p, axis=-1, keepdims=True), approx=False)
        p = p * inv
        ctx = jnp.dot(p, vh, preferred_element_type=jnp.float32)
        o_ref[0, :, sl] = ctx.astype(o_ref.dtype)


def _out_proj_kernel(ctx_ref, w_ref, bias_ref, res_ref, g_ref, b_ref, o_ref,
                     *, eps, post_ln):
    """Attention output projection fused with residual add and optional post-LN."""
    y = jnp.dot(ctx_ref[...].astype(jnp.float32), w_ref[...],
                preferred_element_type=jnp.float32) + bias_ref[...]
    y = y + res_ref[...].astype(jnp.float32)
    if post_ln:
        y = _ln(y, g_ref[...], b_ref[...], eps)
    o_ref[...] = y.astype(o_ref.dtype)


def _ffn_kernel(x_ref, g_ref, bn_ref, w1_ref, b1_ref, w2_ref, b2_ref, o_ref,
                *, eps, ln_pos, act):
    """Fused FFN block: (pre-LN?) -> x@w1+b1 -> act -> @w2+b2 -> +residual -> (post-LN?).

    The [tm, F] hidden activation lives entirely in VMEM/vregs (never hits HBM).
    """
    x = x_ref[...].astype(jnp.float32)
    res = x
    if not ln_pos:
        x = _ln(x, g_ref[...], bn_ref[...], eps)
    h = jnp.dot(x, w1_ref[...], preferred_element_type=jnp.float32) + b1_ref[...]
    h = _apply_act(h, act)
    y = jnp.dot(h, w2_ref[...], preferred_element_type=jnp.float32) + b2_ref[...]
    y = y + res
    if ln_pos:
        y = _ln(y, g_ref[...], bn_ref[...], eps)
    o_ref[...] = y.astype(o_ref.dtype)


# ----------------------------------------------------------------------------
# pallas_call wrappers
# ----------------------------------------------------------------------------
def _row_tiled_params():
    return pltpu.CompilerParams(
        dimension_semantics=("parallel",),
        vmem_limit_bytes=_VMEM_LIMIT,
    )


def qkv_projection(x2d, gamma, beta, wqkv, bqkv, *, eps, pre_ln):
    N, H = x2d.shape
    D3 = wqkv.shape[1]
    tm = _pick_tm(N)
    return pl.pallas_call(
        functools.partial(_qkv_kernel, eps=eps, pre_ln=pre_ln),
        out_shape=jax.ShapeDtypeStruct((N, D3), x2d.dtype),
        grid=(N // tm,),
        in_specs=[
            pl.BlockSpec((tm, H), lambda i: (i, 0)),
            pl.BlockSpec((1, H), lambda i: (0, 0)),
            pl.BlockSpec((1, H), lambda i: (0, 0)),
            pl.BlockSpec((H, D3), lambda i: (0, 0)),
            pl.BlockSpec((1, D3), lambda i: (0, 0)),
        ],
        out_specs=pl.BlockSpec((tm, D3), lambda i: (i, 0)),
        compiler_params=_row_tiled_params(),
    )(x2d, gamma, beta, wqkv, bqkv)


def attention_core(qkv3d, mask, *, nh):
    B, S, H3 = qkv3d.shape
    H = H3 // 3
    Sq, Sk = mask.shape[-2], mask.shape[-1]
    return pl.pallas_call(
        functools.partial(_mha_kernel, nh=nh, scale=1.0 / math.sqrt(H // nh), H=H),
        out_shape=jax.ShapeDtypeStruct((B, S, H), qkv3d.dtype),
        grid=(B,),
        in_specs=[
            pl.BlockSpec((1, S, H3), lambda b: (b, 0, 0)),
            pl.BlockSpec((1, 1, Sq, Sk), lambda b: (b, 0, 0, 0)),
        ],
        out_specs=pl.BlockSpec((1, S, H), lambda b: (b, 0, 0)),
        compiler_params=pltpu.CompilerParams(
            dimension_semantics=("parallel",),
            vmem_limit_bytes=_VMEM_LIMIT,
        ),
    )(qkv3d, mask)


def out_projection(ctx2d, wo, bo, res2d, gamma, beta, *, eps, post_ln):
    N, H = ctx2d.shape
    tm = _pick_tm(N)
    return pl.pallas_call(
        functools.partial(_out_proj_kernel, eps=eps, post_ln=post_ln),
        out_shape=jax.ShapeDtypeStruct((N, H), ctx2d.dtype),
        grid=(N // tm,),
        in_specs=[
            pl.BlockSpec((tm, H), lambda i: (i, 0)),
            pl.BlockSpec((H, H), lambda i: (0, 0)),
            pl.BlockSpec((1, H), lambda i: (0, 0)),
            pl.BlockSpec((tm, H), lambda i: (i, 0)),
            pl.BlockSpec((1, H), lambda i: (0, 0)),
            pl.BlockSpec((1, H), lambda i: (0, 0)),
        ],
        out_specs=pl.BlockSpec((tm, H), lambda i: (i, 0)),
        compiler_params=_row_tiled_params(),
    )(ctx2d, wo, bo, res2d, gamma, beta)


def ffn_block(x2d, gamma, beta, w1, b1, w2, b2, *, eps, ln_pos, act):
    N, H = x2d.shape
    F = w1.shape[1]
    tm = _pick_tm(N)
    return pl.pallas_call(
        functools.partial(_ffn_kernel, eps=eps, ln_pos=ln_pos, act=act),
        out_shape=jax.ShapeDtypeStruct((N, H), x2d.dtype),
        grid=(N // tm,),
        in_specs=[
            pl.BlockSpec((tm, H), lambda i: (i, 0)),
            pl.BlockSpec((1, H), lambda i: (0, 0)),
            pl.BlockSpec((1, H), lambda i: (0, 0)),
            pl.BlockSpec((H, F), lambda i: (0, 0)),
            pl.BlockSpec((1, F), lambda i: (0, 0)),
            pl.BlockSpec((F, H), lambda i: (0, 0)),
            pl.BlockSpec((1, H), lambda i: (0, 0)),
        ],
        out_specs=pl.BlockSpec((tm, H), lambda i: (i, 0)),
        compiler_params=_row_tiled_params(),
    )(x2d, gamma, beta, w1, b1, w2, b2)


# ----------------------------------------------------------------------------
# EncoderLayer forward (4 fused pallas_calls)
# ----------------------------------------------------------------------------
def encoder_layer_forward(p, src, src_mask, cfg):
    B, S, H = src.shape
    nh, eps, ln_pos, act = cfg["nh"], cfg["eps"], cfg["ln_pos"], cfg["act"]
    x2 = src.reshape(B * S, H)

    # (pre-LN if not ln_pos) + fused QKV projection
    qkv = qkv_projection(x2, p["attn_norm"]["g"], p["attn_norm"]["b"],
                         p["attn"]["wqkv"], p["attn"]["bqkv"],
                         eps=eps, pre_ln=not ln_pos)

    # attention core: grid over batch, all heads per step
    ctx = attention_core(qkv.reshape(B, S, 3 * H), src_mask, nh=nh)

    # output projection + residual + (post-LN if ln_pos)
    attn_out = out_projection(ctx.reshape(B * S, H), p["attn"]["wo"], p["attn"]["bo"],
                              x2, p["attn_norm"]["g"], p["attn_norm"]["b"],
                              eps=eps, post_ln=ln_pos)

    # fused FFN block (pre-LN? / matmul+act+matmul / residual / post-LN?)
    out = ffn_block(attn_out, p["ffn_norm"]["g"], p["ffn_norm"]["b"],
                    p["ffn"]["w1"], p["ffn"]["b1"], p["ffn"]["w2"], p["ffn"]["b2"],
                    eps=eps, ln_pos=ln_pos, act=act)
    return out.reshape(B, S, H)


# ----------------------------------------------------------------------------
# Pure-JAX reference (mirrors the PyTorch EncoderLayer forward)
# ----------------------------------------------------------------------------
def _ref_ln(x, g, b, eps):
    mu = x.mean(-1, keepdims=True)
    var = ((x - mu) ** 2).mean(-1, keepdims=True)
    return (x - mu) / jnp.sqrt(var + eps) * g[0] + b[0]


def _ref_act(x, act):
    if act == "gelu":
        return x * 0.5 * (1.0 + jax.lax.erf(x / 1.41421))
    if act == "relu":
        return jnp.maximum(x, 0.0)
    return x * jax.nn.sigmoid(x)


def ref_encoder_layer(p, src, mask, cfg):
    H, nh, eps, ln_pos, act = cfg["H"], cfg["nh"], cfg["eps"], cfg["ln_pos"], cfg["act"]
    hd = H // nh
    B, S, _ = src.shape

    h = src
    x = src if ln_pos else _ref_ln(src, p["attn_norm"]["g"], p["attn_norm"]["b"], eps)
    wqkv, bqkv = p["attn"]["wqkv"], p["attn"]["bqkv"]
    q = x @ wqkv[:, :H] + bqkv[0, :H]
    k = x @ wqkv[:, H:2 * H] + bqkv[0, H:2 * H]
    v = x @ wqkv[:, 2 * H:] + bqkv[0, 2 * H:]
    qh = q.reshape(B, S, nh, hd).transpose(0, 2, 1, 3)
    kh = k.reshape(B, S, nh, hd).transpose(0, 2, 1, 3)
    vh = v.reshape(B, S, nh, hd).transpose(0, 2, 1, 3)
    s = jnp.einsum("bhqd,bhkd->bhqk", qh, kh) / math.sqrt(hd) + mask
    pr = jax.nn.softmax(s, axis=-1)
    ctx = jnp.einsum("bhqk,bhkd->bhqd", pr, vh).transpose(0, 2, 1, 3).reshape(B, S, H)
    attn = ctx @ p["attn"]["wo"] + p["attn"]["bo"][0]
    x = h + attn
    if ln_pos:
        x = _ref_ln(x, p["attn_norm"]["g"], p["attn_norm"]["b"], eps)

    h = x
    y = x if ln_pos else _ref_ln(x, p["ffn_norm"]["g"], p["ffn_norm"]["b"], eps)
    y = _ref_act(y @ p["ffn"]["w1"] + p["ffn"]["b1"][0], act)
    y = y @ p["ffn"]["w2"] + p["ffn"]["b2"][0]
    x = h + y
    if ln_pos:
        x = _ref_ln(x, p["ffn_norm"]["g"], p["ffn_norm"]["b"], eps)
    return x


# ----------------------------------------------------------------------------
# Deterministic parameter init (mirrors module __init__ shapes / std=0.02)
# ----------------------------------------------------------------------------
def init_encoder_layer_params(key, cfg):
    H, F = cfg["H"], cfg["ff"]
    std = 0.02
    ctr = [0]

    def nrm(shape):
        ctr[0] += 1
        return std * jax.random.normal(jax.random.fold_in(key, ctr[0]), shape, jnp.float32)

    zeros = lambda s: jnp.zeros(s, jnp.float32)
    ones = lambda s: jnp.ones(s, jnp.float32)

    wq, wk, wv = nrm((H, H)), nrm((H, H)), nrm((H, H))
    return dict(
        attn_norm=dict(g=ones((1, H)), b=zeros((1, H))),
        ffn_norm=dict(g=ones((1, H)), b=zeros((1, H))),
        attn=dict(wqkv=jnp.concatenate([wq, wk, wv], axis=1),  # [H, 3H]
                  bqkv=zeros((1, 3 * H)),
                  wo=nrm((H, H)), bo=zeros((1, H))),
        ffn=dict(w1=nrm((H, F)), b1=zeros((1, F)),
                 w2=nrm((F, H)), b2=zeros((1, H))),
    )


# ----------------------------------------------------------------------------
if __name__ == "__main__":
    B, S = 2, 8
    key = jax.random.PRNGKey(0)

    for ln_pos in (True, False):   # exercise both post-LN and pre-LN paths
        cfg = dict(H=32, nh=4, ff=64, eps=1e-12, ln_pos=ln_pos, act="gelu")
        params = init_encoder_layer_params(jax.random.fold_in(key, int(ln_pos)), cfg)
        src = jax.random.normal(jax.random.fold_in(key, 100 + int(ln_pos)),
                                (B, S, cfg["H"]), jnp.float32)

        # additive padding mask [B, 1, Sq, Sk]: batch 0 sees all 8 keys, batch 1 first 6
        lengths = jnp.array([8, 6])
        key_ids = jnp.arange(S)
        pad = jnp.where(key_ids[None, :] < lengths[:, None], 0.0, -1e9).astype(jnp.float32)
        src_mask = jnp.broadcast_to(pad[:, None, None, :], (B, 1, S, S))

        out = encoder_layer_forward(params, src, src_mask, cfg)
        out = jax.block_until_ready(out)

        ref = ref_encoder_layer(params, src, src_mask, cfg)
        assert out.shape == (B, S, cfg["H"]), out.shape
        max_err = float(jnp.max(jnp.abs(out - ref)))
        assert jnp.allclose(out, ref, atol=2e-4, rtol=2e-4), max_err

    print("KERNEL_OK")
</pallas_src>

<mosaic_0001>
module attributes {stable_mosaic.version = 11 : i64} {
  func.func @_qkv_kernel(%arg0: i32, %arg1: memref<16x32xf32, #tpu.memory_space<vmem>>, %arg2: memref<1x32xf32, #tpu.memory_space<vmem>>, %arg3: memref<1x32xf32, #tpu.memory_space<vmem>>, %arg4: memref<32x96xf32, #tpu.memory_space<vmem>>, %arg5: memref<1x96xf32, #tpu.memory_space<vmem>>, %arg6: memref<16x96xf32, #tpu.memory_space<vmem>>) attributes {dimension_semantics = [#tpu.dimension_semantics<parallel>], iteration_bounds = array<i64: 1>, scalar_prefetch = 0 : i64, scratch_operands = 0 : i64, tpu.core_type = #tpu.core_type<tc>, window_params = [{transform_indices = @transform_0, window_bounds = array<i64: 16, 32>}, {pipeline_mode = #tpu.pipeline_mode<synchronous>, transform_indices = @transform_1, window_bounds = array<i64: 1, 32>}, {pipeline_mode = #tpu.pipeline_mode<synchronous>, transform_indices = @transform_2, window_bounds = array<i64: 1, 32>}, {pipeline_mode = #tpu.pipeline_mode<synchronous>, transform_indices = @transform_3, window_bounds = array<i64: 32, 96>}, {pipeline_mode = #tpu.pipeline_mode<synchronous>, transform_indices = @transform_4, window_bounds = array<i64: 1, 96>}, {transform_indices = @transform_5, window_bounds = array<i64: 16, 96>}]} {
    %c0 = arith.constant 0 : index
    %c0_0 = arith.constant 0 : index
    %0 = vector.load %arg1[%c0, %c0_0] : memref<16x32xf32, #tpu.memory_space<vmem>>, vector<16x32xf32>
    %c0_1 = arith.constant 0 : index
    %c0_2 = arith.constant 0 : index
    %1 = vector.load %arg4[%c0_1, %c0_2] : memref<32x96xf32, #tpu.memory_space<vmem>>, vector<32x96xf32>
    %cst = arith.constant dense<0.000000e+00> : vector<16x96xf32>
    %2 = tpu.matmul %0, %1, %cst {dimension_numbers = #tpu.dot_dimension_numbers<[1], [0], [0], [1], [0, 0, 1, 1], [], []>} : vector<16x32xf32>, vector<32x96xf32>, vector<16x96xf32> -> vector<16x96xf32>
    %c0_3 = arith.constant 0 : index
    %c0_4 = arith.constant 0 : index
    %3 = vector.load %arg5[%c0_3, %c0_4] : memref<1x96xf32, #tpu.memory_space<vmem>>, vector<1x96xf32>
    %4 = vector.broadcast %3 : vector<1x96xf32> to vector<16x96xf32>
    %5 = arith.addf %2, %4 : vector<16x96xf32>
    %c0_5 = arith.constant 0 : index
    %c0_6 = arith.constant 0 : index
    %6 = vector.load %arg6[%c0_5, %c0_6] : memref<16x96xf32, #tpu.memory_space<vmem>>, vector<16x96xf32>
    tpu.vector_store %arg6[%c0_5, %c0_6], %5 {strides = array<i32>} : memref<16x96xf32, #tpu.memory_space<vmem>>, vector<16x96xf32>,
    return
  }
  func.func @transform_0(%arg0: i32) -> (i32, i32) {
    %c0_i32 = arith.constant 0 : i32
    %c0_i32_0 = arith.constant 0 : i32
    return %arg0, %c0_i32 : i32, i32
  }
  func.func @transform_1(%arg0: i32) -> (i32, i32) {
    %c0_i32 = arith.constant 0 : i32
    %c0_i32_0 = arith.constant 0 : i32
    %c0_i32_1 = arith.constant 0 : i32
    return %c0_i32, %c0_i32_0 : i32, i32
  }
  func.func @transform_2(%arg0: i32) -> (i32, i32) {
    %c0_i32 = arith.constant 0 : i32
    %c0_i32_0 = arith.constant 0 : i32
    %c0_i32_1 = arith.constant 0 : i32
    return %c0_i32, %c0_i32_0 : i32, i32
  }
  func.func @transform_3(%arg0: i32) -> (i32, i32) {
    %c0_i32 = arith.constant 0 : i32
    %c0_i32_0 = arith.constant 0 : i32
    %c0_i32_1 = arith.constant 0 : i32
    return %c0_i32, %c0_i32_0 : i32, i32
  }
  func.func @transform_4(%arg0: i32) -> (i32, i32) {
    %c0_i32 = arith.constant 0 : i32
    %c0_i32_0 = arith.constant 0 : i32
    %c0_i32_1 = arith.constant 0 : i32
    return %c0_i32, %c0_i32_0 : i32, i32
  }
  func.func @transform_5(%arg0: i32) -> (i32, i32) {
    %c0_i32 = arith.constant 0 : i32
    %c0_i32_0 = arith.constant 0 : i32
    return %arg0, %c0_i32 : i32, i32
  }
}

</mosaic_0001>

<llo_original>
// kernel: tpu_custom_call.1
$region0: #{tpu_custom_call.1}
  #allocation0 [shape = 'u32[]', space=smem, size = 0x4, offset = 0x4, fixed_abs, tag = 'smem constant byte address 0x4 - core index']
  #allocation1 [shape = 'u32[144,128]{1,0:T(1,128)}', space=vmem, size = 0x12000, scoped, tag = 'internal scratch']
  %s0 = inlined_call_operand.hbm [shape: f32[16,32], index: 0, kind: input, shape index: {}]
  %s1 = inlined_call_operand.hbm [shape: f32[1,32], index: 1, kind: input, shape index: {}]
  %s2 = inlined_call_operand.hbm [shape: f32[1,32], index: 2, kind: input, shape index: {}]
  %s3 = inlined_call_operand.hbm [shape: f32[32,96], index: 3, kind: input, shape index: {}]
  %s4 = inlined_call_operand.hbm [shape: f32[1,96], index: 4, kind: input, shape index: {}]
  %s5 = inlined_call_operand.hbm [shape: f32[16,96], index: 5, kind: output, shape index: {}]
  %s6 = sld [smem:[#allocation0]]
  $region50: #{tpu_custom_call.1} parent=0
    _
  %s8 = ssub.s32 1, %s6
  %s9 = scalar_select 0, %s8, %s6
  $region1: #{tpu_custom_call.1} parent=0
    #allocation2 [shape = 'u8[8192]{0}', space=vmem, size = 0x2000, scoped, tag = 'input window, operand 0, single buffered']
    #allocation3 [shape = 's32[1]{0}', space=sflag, size = 0x4, scoped, tag = 'scoped memory for tpu_custom_call.1']
    #allocation4 [shape = 's32[1]{0}', space=sflag, size = 0x4, scoped, tag = 'scoped memory for tpu_custom_call.1']
    #allocation5 [shape = 'u8[512]{0}', space=vmem, size = 0x400, scoped, tag = 'input window, operand 1, single buffered']
    #allocation6 [shape = 's32[1]{0}', space=sflag, size = 0x4, scoped, tag = 'scoped memory for tpu_custom_call.1']
    #allocation7 [shape = 'u8[512]{0}', space=vmem, size = 0x400, scoped, tag = 'input window, operand 2, single buffered']
    #allocation8 [shape = 'u8[16384]{0}', space=vmem, size = 0x4000, scoped, tag = 'input window, operand 3, single buffered']
    #allocation9 [shape = 's32[1]{0}', space=sflag, size = 0x4, scoped, tag = 'scoped memory for tpu_custom_call.1']
    #allocation10 [shape = 'u8[512]{0}', space=vmem, size = 0x400, scoped, tag = 'input window, operand 4, single buffered']
    #allocation11 [shape = 'u8[8192]{0}', space=vmem, size = 0x2000, scoped, tag = 'output window, operand 0, single buffered']
    %10 = vsyncpa [#allocation3], 0
    %11 = vsyncpa [#allocation6], 0
    %12 = vsyncpa [#allocation9], 0
    %13 = vsyncpa [#allocation4], 0
    // Predicated region
    $region2: #{tpu_custom_call.1} parent=1 // pred_check
      _
    $region3: #{tpu_custom_call.1} parent=1 // pred_check_branch
      %15 = sbr.rel (0) target = $region5
    $region4: #{tpu_custom_call.1} parent=1 // pred_region
      %s17 = ssub.s32 256, 256
      %18 = vsyncadd [#allocation3], %s17
      %s19 = sshll.u32 [#allocation2], 4
      %s20 = int_to_ptr.vmem [resolvable:$true] %s19
      %25 = dma.hbm_to_vmem [thread:$0]  %s0, 256, %s20, [#allocation3], 128, 128, 8
    $region5: #{tpu_custom_call.1} parent=1 // pred_fallthru
      _
    // Predicated region
    $region6: #{tpu_custom_call.1} parent=1 // pred_check
      _
    $region7: #{tpu_custom_call.1} parent=1 // pred_check_branch
      %27 = sbr.rel (0) target = $region9
    $region8: #{tpu_custom_call.1} parent=1 // pred_region
      %s29 = ssub.s32 16, 16
      %30 = vsyncadd [#allocation6], %s29
      %s32 = sshll.u32 [#allocation5], 4
      %s33 = int_to_ptr.vmem [resolvable:$true] %s32
      %35 = dma.hbm_to_vmem [thread:$0]  %s1, 16, %s33, [#allocation6]
    $region9: #{tpu_custom_call.1} parent=1 // pred_fallthru
      _
    // Predicated region
    $region10: #{tpu_custom_call.1} parent=1 // pred_check
      _
    $region11: #{tpu_custom_call.1} parent=1 // pred_check_branch
      %37 = sbr.rel (0) target = $region13
    $region12: #{tpu_custom_call.1} parent=1 // pred_region
      %s39 = ssub.s32 16, 16
      %40 = vsyncadd [#allocation6], %s39
      %s42 = sshll.u32 [#allocation7], 4
      %s43 = int_to_ptr.vmem [resolvable:$true] %s42
      %45 = dma.hbm_to_vmem [thread:$0]  %s2, 16, %s43, [#allocation6]
    $region13: #{tpu_custom_call.1} parent=1 // pred_fallthru
      _
    // Predicated region
    $region14: #{tpu_custom_call.1} parent=1 // pred_check
      _
    $region15: #{tpu_custom_call.1} parent=1 // pred_check_branch
      %47 = sbr.rel (0) target = $region17
    $region16: #{tpu_custom_call.1} parent=1 // pred_region
      %s49 = ssub.s32 512, 512
      %50 = vsyncadd [#allocation9], %s49
      %s51 = sshll.u32 [#allocation8], 4
      %s52 = int_to_ptr.vmem [resolvable:$true] %s51
      %57 = dma.hbm_to_vmem [thread:$0]  %s3, 512, %s52, [#allocation9], 128, 128, 8
    $region17: #{tpu_custom_call.1} parent=1 // pred_fallthru
      _
    // Predicated region
    $region18: #{tpu_custom_call.1} parent=1 // pred_check
      _
    $region19: #{tpu_custom_call.1} parent=1 // pred_check_branch
      %59 = sbr.rel (0) target = $region21
    $region20: #{tpu_custom_call.1} parent=1 // pred_region
      %s61 = ssub.s32 16, 16
      %62 = vsyncadd [#allocation9], %s61
      %s64 = sshll.u32 [#allocation10], 4
      %s65 = int_to_ptr.vmem [resolvable:$true] %s64
      %67 = dma.hbm_to_vmem [thread:$0]  %s4, 16, %s65, [#allocation9]
    $region21: #{tpu_custom_call.1} parent=1 // pred_fallthru
      _
    // Predicated region
    $region22: #{tpu_custom_call.1} parent=1 // pred_check
      _
    $region23: #{tpu_custom_call.1} parent=1 // pred_check_branch
      %69 = sbr.rel (0) target = $region25
    $region24: #{tpu_custom_call.1} parent=1 // pred_region
      %70 = dma.done [#allocation3], 256
    $region25: #{tpu_custom_call.1} parent=1 // pred_fallthru
      _
    // Predicated region
    $region26: #{tpu_custom_call.1} parent=1 // pred_check
      _
    $region27: #{tpu_custom_call.1} parent=1 // pred_check_branch
      %72 = sbr.rel (0) target = $region29
    $region28: #{tpu_custom_call.1} parent=1 // pred_region
      %73 = dma.done [#allocation6], 16
    $region29: #{tpu_custom_call.1} parent=1 // pred_fallthru
      _
    // Predicated region
    $region30: #{tpu_custom_call.1} parent=1 // pred_check
      _
    $region31: #{tpu_custom_call.1} parent=1 // pred_check_branch
      %75 = sbr.rel (0) target = $region33
    $region32: #{tpu_custom_call.1} parent=1 // pred_region
      %76 = dma.done [#allocation6], 16
    $region33: #{tpu_custom_call.1} parent=1 // pred_fallthru
      _
    // Predicated region
    $region34: #{tpu_custom_call.1} parent=1 // pred_check
      _
    $region35: #{tpu_custom_call.1} parent=1 // pred_check_branch
      %78 = sbr.rel (0) target = $region37
    $region36: #{tpu_custom_call.1} parent=1 // pred_region
      %79 = dma.done [#allocation9], 512
    $region37: #{tpu_custom_call.1} parent=1 // pred_fallthru
      _
    // Predicated region
    $region38: #{tpu_custom_call.1} parent=1 // pred_check
      _
    $region39: #{tpu_custom_call.1} parent=1 // pred_check_branch
      %81 = sbr.rel (0) target = $region41
    $region40: #{tpu_custom_call.1} parent=1 // pred_region
      %82 = dma.done [#allocation9], 16
    $region41: #{tpu_custom_call.1} parent=1 // pred_fallthru
      _
    %v83 = vld [vmem:[#allocation2] sm:$0xff]
    %v84 = vld [vmem:[#allocation2 + $0x8] sm:$0xff]
    %v85 = vld [vmem:[#allocation8] sm:$0xff]
    %v86 = vld [vmem:[#allocation8 + $0x8] sm:$0xff]
    %v87 = vld [vmem:[#allocation8 + $0x10] sm:$0xff]
    %v88 = vld [vmem:[#allocation8 + $0x18] sm:$0xff]
    %v89 = vld [vmem:[#allocation10] sm:$0x1]
    %v91 = vlaneseq
    %v92 = vshrl.u32 %v91, 7
    %v93 = vsub.s32 0, %v92
    %v94 = vrot.slane %v89, %v93
    %vm96 = vcmask 261120
    %v98 = vsel %vm96, %v83, 0
    %v101 = vsel %vm96, %v84, 0
    %103 = vmatprep.subr.mxu0 0.0
    %104 = vmatpush1.msra.mxu0 %v85
    %105 = vmatprep.subr.mxu0 0.0
    %106 = vmatpush1.msra.mxu0 %v86
    %107 = vmatprep.subr.mxu0 0.0
    %108 = vmatpush1.msra.mxu0 %v87
    %109 = vmatprep.subr.mxu0 0.0
    %110 = vmatpush1.msra.mxu0 %v88
    %111 = vmatprep.subr.mxu0 0.0
    %112 = vmatpush1.msra.mxu0 0.0
    %113 = vmatprep.subr.mxu0 0.0
    %114 = vmatpush1.msra.mxu0 0.0
    %115 = vmatprep.subr.mxu0 0.0
    %116 = vmatpush1.msra.mxu0 0.0
    %117 = vmatprep.subr.mxu0 0.0
    %118 = vmatpush1.msra.mxu0 0.0
    %119 = vmatprep.subr.mxu0 0.0
    %120 = vmatpush1.msra.mxu0 0.0
    %121 = vmatprep.subr.mxu0 0.0
    %122 = vmatpush1.msra.mxu0 0.0
    %123 = vmatprep.subr.mxu0 0.0
    %124 = vmatpush1.msra.mxu0 0.0
    %125 = vmatprep.subr.mxu0 0.0
    %126 = vmatpush1.msra.mxu0 0.0
    %127 = vmatprep.subr.mxu0 0.0
    %128 = vmatpush1.msra.mxu0 0.0
    %129 = vmatprep.subr.mxu0 0.0
    %130 = vmatpush1.msra.mxu0 0.0
    %131 = vmatprep.subr.mxu0 0.0
    %132 = vmatpush1.msra.mxu0 0.0
    %133 = vmatprep.subr.mxu0 0.0
    %134 = vmatpush1.msra.mxu0 0.0
    %135 = vmatprep.subr.mxu0 0.0
    %136 = vmatpush1.msra.mxu0 0.0
    %137 = vmatprep.subr.mxu0 0.0
    %138 = vmatpush1.msra.mxu0 0.0
    %139 = vmatprep.subr.mxu0 0.0
    %140 = vmatpush1.msra.mxu0 0.0
    %141 = vmatprep.subr.mxu0 0.0
    %142 = vmatpush1.msra.mxu0 0.0
    %143 = vmatprep.subr.mxu0 0.0
    %144 = vmatpush1.msra.mxu0 0.0
    %145 = vmatprep.subr.mxu0 0.0
    %146 = vmatpush1.msra.mxu0 0.0
    %147 = vmatprep.subr.mxu0 0.0
    %148 = vmatpush1.msra.mxu0 0.0
    %149 = vmatprep.subr.mxu0 0.0
    %150 = vmatpush1.msra.mxu0 0.0
    %151 = vmatprep.subr.mxu0 0.0
    %152 = vmatpush1.msra.mxu0 0.0
    %153 = vmatprep.subr.mxu0 0.0
    %154 = vmatpush1.msra.mxu0 0.0
    %155 = vmatprep.subr.mxu0 0.0
    %156 = vmatpush1.msra.mxu0 0.0
    %157 = vmatprep.subr.mxu0 0.0
    %158 = vmatpush1.msra.mxu0 0.0
    %159 = vmatprep.subr.mxu0 0.0
    %160 = vmatpush1.msra.mxu0 0.0
    %161 = vmatprep.subr.mxu0 0.0
    %162 = vmatpush1.msra.mxu0 0.0
    %163 = vmatprep.subr.mxu0 0.0
    %164 = vmatpush1.msra.mxu0 0.0
    %165 = vmatprep.subr.mxu0 0.0
    %166 = vmatpush1.msra.mxu0 0.0
    %167 = vmatprep.mubr.f32.mxu0 0.0
    %168 = vmatmul.mubr.f32.gmra.mrb[0].mxu0 %v98
    %v169 = vpop.f32.mrb[0].mxu0
    %v170 = vadd.f32 %v94, %v169
    %v171 = vpop.f32.mrb[0].mxu0
    %172 = vmatprep.mubr.f32.mxu0 0.0
    %173 = vmatmul.mubr.f32.gmra.mrb[0].mxu0 %v101
    %v174 = vpop.f32.mrb[0].mxu0
    %v175 = vadd.f32 %v94, %v174
    %v176 = vpop.f32.mrb[0].mxu0
    %177 = vdwg.mxu0
    %vm178 = vcmask 785408
    %179 = vst.msk [vmem:[#allocation11] sm:$0xff] %vm178, %v170
    %180 = vst.msk [vmem:[#allocation11 + $0x8] sm:$0xff] %vm178, %v175
    // Predicated region
    $region42: #{tpu_custom_call.1} parent=1 // pred_check
      _
    $region43: #{tpu_custom_call.1} parent=1 // pred_check_branch
      %182 = sbr.rel (0) target = $region45
    $region44: #{tpu_custom_call.1} parent=1 // pred_region
      %s184 = ssub.s32 256, 256
      %185 = vsyncadd [#allocation4], %s184
      %s186 = sshll.u32 [#allocation11], 4
      %s187 = int_to_ptr.vmem [resolvable:$true] %s186
      %192 = dma.vmem_to_hbm [thread:$0]  %s187, 256, %s5, [#allocation4], 128, 128, 8
    $region45: #{tpu_custom_call.1} parent=1 // pred_fallthru
      _
    // Predicated region
    $region46: #{tpu_custom_call.1} parent=1 // pred_check
      _
    $region47: #{tpu_custom_call.1} parent=1 // pred_check_branch
      %194 = sbr.rel (0) target = $region49
    $region48: #{tpu_custom_call.1} parent=1 // pred_region
      %195 = dma.done [#allocation4], 256
    $region49: #{tpu_custom_call.1} parent=1 // pred_fallthru
      _
    %196 = vsyncpa [#allocation3], 1
    %197 = vsyncpa [#allocation6], 1
    %198 = vsyncpa [#allocation9], 1
    %199 = vsyncpa [#allocation4], 1

</llo_original>
